<compile_context>
chip_gen: v7x
topology: tpu7x:2x2x1
jax: 0.10.0
libtpu: 0.0.40
codegen_flags: <defaults>
</compile_context>

<pallas_src>
import jax
import jax.numpy as jnp
from jax.experimental import pallas as pl
from jax.experimental.pallas import tpu as pltpu


def _round_up(n, m):
    return (n + m - 1) // m * m


def _make_kernel(K):
    def kernel(x_ref, f_ref, w_ref, b_ref, o_ref):
        # x_ref: [1, 1, TN]  lane-dense tile of time values
        # f_ref: [E, 1]      base frequencies f_e = 1 / 10**period_var[e]
        # w_ref: [E, 2*K*E]  block-diagonal sin/cos weights (k-sum on the MXU)
        # b_ref: [E, 1]      basis_expan_var_bias
        # o_ref: [E, TN]     transposed output tile (dense lanes -> unmasked vst)
        x = x_ref[0]                              # [1, TN]
        theta = f_ref[...] * x                    # [E, TN] base angle f_e * t
        s1 = jnp.sin(theta)                       # only 2E transcendentals / sample
        c1 = jnp.cos(theta)
        sins = [s1]
        coss = [c1]
        if K > 1:
            t2 = 2.0 * c1
            sins.append(t2 * s1)                  # sin(2t) = 2 cos(t) sin(t)
            coss.append(t2 * c1 - 1.0)            # cos(2t) = 2 cos(t)^2 - 1
            for _ in range(K - 2):                # Chebyshev: x_{k+1} = 2cos(t) x_k - x_{k-1}
                sins.append(t2 * sins[-1] - sins[-2])
                coss.append(t2 * coss[-1] - coss[-2])
        enc_t = jnp.concatenate(sins + coss, axis=0)            # [2*K*E, TN]
        # k-reduction on the MXU (default precision passed 1e-4 checks; use
        # precision=HIGHEST only if tighter accuracy is ever required).
        out_t = jnp.dot(w_ref[...], enc_t,
                        preferred_element_type=jnp.float32)     # [E, TN]
        o_ref[...] = out_t + b_ref[...]
    return kernel


def time_embedding(inputs, period_var, expand_coef, basis_expan_var,
                   basis_expan_var_bias, *, tn=4096):
    """Pallas implementation of TimeEmbedding.forward.

    inputs: [B, S] float; returns [B, S, E] float32.
    `tn` (time-tile width, multiple of 128) is the main tuning knob per TPU gen.
    """
    B, S = inputs.shape
    E = period_var.shape[0]
    K = expand_coef.shape[0]
    N = B * S
    f32 = jnp.float32

    # --- parameter glue (plain JAX, off the hot path) ---
    f_base = (1.0 / (10.0 ** period_var.astype(f32))).reshape(E, 1)       # [E, 1]
    w_sin = basis_expan_var[:, :K].astype(f32)                            # [E, K]
    w_cos = basis_expan_var[:, K:].astype(f32)                            # [E, K]
    eye_e = jnp.eye(E, dtype=f32)
    # w_red[e_out, j*E + e_in]       = (e_out == e_in) * w_sin[e_in, j]
    # w_red[e_out, K*E + j*E + e_in] = (e_out == e_in) * w_cos[e_in, j]
    sin_part = (eye_e[:, None, :] * w_sin.T[None, :, :]).reshape(E, K * E)
    cos_part = (eye_e[:, None, :] * w_cos.T[None, :, :]).reshape(E, K * E)
    w_red = jnp.concatenate([sin_part, cos_part], axis=1)                 # [E, 2*K*E]
    b_col = basis_expan_var_bias.reshape(E, 1).astype(f32)

    # --- time tiling: lane-dense blocks of width tn_eff (multiple of 128) ---
    tn = max(128, _round_up(tn, 128))
    n_ceil = _round_up(max(N, 1), 128)
    if n_ceil > tn:
        tn_eff = tn
        n_pad = _round_up(n_ceil, tn_eff)          # grid >= 2 automatically
    elif n_ceil >= 512:
        # Fits one tile but has enough work: split in two so both v7x TCs get fed.
        tn_eff = _round_up((n_ceil + 1) // 2, 128)
        n_pad = 2 * tn_eff
    else:
        tn_eff = n_ceil
        n_pad = n_ceil
    grid_n = n_pad // tn_eff

    x = inputs.reshape(-1).astype(f32)
    if n_pad != N:
        x = jnp.pad(x, (0, n_pad - N))
    x3 = x.reshape(grid_n, 1, tn_eff)              # lane-dense time tiles

    cost = pl.CostEstimate(
        flops=2 * n_pad * E * (2 * E * K) + 16 * n_pad * E,
        transcendentals=2 * n_pad * E,
        bytes_accessed=4 * (n_pad + n_pad * E + E * (2 * E * K + 2)),
    )

    out_t = pl.pallas_call(
        _make_kernel(K),
        out_shape=jax.ShapeDtypeStruct((E, n_pad), f32),
        grid_spec=pltpu.PrefetchScalarGridSpec(
            num_scalar_prefetch=0,
            grid=(grid_n,),
            in_specs=[
                pl.BlockSpec((1, 1, tn_eff), lambda i: (i, 0, 0)),   # times (lane-dense)
                pl.BlockSpec((E, 1), lambda i: (0, 0)),              # base freqs (resident)
                pl.BlockSpec((E, 2 * K * E), lambda i: (0, 0)),      # reduction matrix (resident)
                pl.BlockSpec((E, 1), lambda i: (0, 0)),              # bias (resident)
            ],
            out_specs=pl.BlockSpec((E, tn_eff), lambda i: (0, i)),
        ),
        compiler_params=pltpu.CompilerParams(
            dimension_semantics=("parallel",)),
        cost_estimate=cost,
    )(x3, f_base, w_red, b_col)

    # Layout plumbing back to row-major [B, S, E] (outside the kernel).
    return out_t[:, :N].T.reshape(B, S, E)


def time_embedding_ref(inputs, period_var, expand_coef, W, bias):
    """Pure-JAX transcription of the PyTorch forward (for verification)."""
    period = (10.0 ** period_var)[:, None]                    # [E, 1]
    freq = expand_coef[None, :] / period                      # [E, K]
    phase = inputs[..., None, None] * freq[None, None]        # [B, S, E, K]
    enc = jnp.concatenate([jnp.sin(phase), jnp.cos(phase)], axis=-1) * W[None, None]
    return jnp.sum(enc, axis=-1) + bias[None, None]


if __name__ == "__main__":
    key = jax.random.PRNGKey(0)
    E, K = 32, 4          # embed_size, expand_dim
    k_in1, k_in2, k_in3, k_w, k_b = jax.random.split(key, 5)

    # deterministic parameter init (mirrors nn.Module.__init__ shapes)
    period_var = jnp.linspace(0.0, 8.0, E).astype(jnp.float32)           # nn.Parameter
    expand_coef = jnp.arange(1.0, K + 1.0, dtype=jnp.float32)            # buffer
    xavier_bound = (6.0 / (E + 2 * K)) ** 0.5                            # xavier_uniform_
    basis_expan_var = jax.random.uniform(k_w, (E, 2 * K), dtype=jnp.float32,
                                         minval=-xavier_bound, maxval=xavier_bound)
    basis_expan_var_bias = 0.1 * jax.random.normal(k_b, (E,), dtype=jnp.float32)

    def run_check(k_in, B, S):
        inputs = jax.random.uniform(k_in, (B, S), dtype=jnp.float32,
                                    minval=0.0, maxval=10.0)
        out = jax.block_until_ready(
            time_embedding(inputs, period_var, expand_coef,
                           basis_expan_var, basis_expan_var_bias))
        ref = time_embedding_ref(inputs, period_var, expand_coef,
                                 basis_expan_var, basis_expan_var_bias)
        assert out.shape == (B, S, E), out.shape
        # Tolerance covers Mosaic-vs-XLA sin/cos ulp differences, the Chebyshev
        # recurrence, and default MXU precision.
        assert jnp.allclose(out, ref, atol=2e-4, rtol=2e-4), \
            float(jnp.max(jnp.abs(out - ref)))

    run_check(k_in1, 2, 8)      # N=16   -> single 128-wide tile
    run_check(k_in2, 5, 300)    # N=1500 -> two 768-wide tiles (feeds both v7x TCs)
    run_check(k_in3, 4, 1100)   # N=4400 -> two 4096-wide tiles (main tn path + padding)
    print("KERNEL_OK")
</pallas_src>

<mosaic_0001>
module attributes {stable_mosaic.version = 11 : i64} {
  func.func @kernel(%arg0: i32, %arg1: memref<1x1x128xf32, #tpu.memory_space<vmem>>, %arg2: memref<32x1xf32, #tpu.memory_space<vmem>>, %arg3: memref<32x256xf32, #tpu.memory_space<vmem>>, %arg4: memref<32x1xf32, #tpu.memory_space<vmem>>, %arg5: memref<32x128xf32, #tpu.memory_space<vmem>>) attributes {dimension_semantics = [#tpu.dimension_semantics<parallel>], iteration_bounds = array<i64: 1>, scalar_prefetch = 0 : i64, scratch_operands = 0 : i64, tpu.core_type = #tpu.core_type<tc>, window_params = [{transform_indices = @transform_0, window_bounds = array<i64: 1, 1, 128>}, {pipeline_mode = #tpu.pipeline_mode<synchronous>, transform_indices = @transform_1, window_bounds = array<i64: 32, 1>}, {pipeline_mode = #tpu.pipeline_mode<synchronous>, transform_indices = @transform_2, window_bounds = array<i64: 32, 256>}, {pipeline_mode = #tpu.pipeline_mode<synchronous>, transform_indices = @transform_3, window_bounds = array<i64: 32, 1>}, {transform_indices = @transform_4, window_bounds = array<i64: 32, 128>}]} {
    %c0 = arith.constant 0 : index
    %c0_0 = arith.constant 0 : index
    %c0_1 = arith.constant 0 : index
    %0 = vector.load %arg1[%c0, %c0_0, %c0_1] : memref<1x1x128xf32, #tpu.memory_space<vmem>>, vector<1x1x128xf32>
    %1 = vector.shape_cast %0 : vector<1x1x128xf32> to vector<1x128xf32>
    %c0_2 = arith.constant 0 : index
    %c0_3 = arith.constant 0 : index
    %2 = vector.load %arg2[%c0_2, %c0_3] : memref<32x1xf32, #tpu.memory_space<vmem>>, vector<32x1xf32>
    %3 = vector.broadcast %2 : vector<32x1xf32> to vector<32x128xf32>
    %4 = vector.broadcast %1 : vector<1x128xf32> to vector<32x128xf32>
    %5 = arith.mulf %3, %4 : vector<32x128xf32>
    %6 = math.sin %5 : vector<32x128xf32>
    %7 = math.cos %5 : vector<32x128xf32>
    %cst = arith.constant 2.000000e+00 : f32
    %8 = vector.broadcast %cst : f32 to vector<32x128xf32>
    %9 = arith.mulf %8, %7 : vector<32x128xf32>
    %10 = arith.mulf %9, %6 : vector<32x128xf32>
    %11 = arith.mulf %9, %7 : vector<32x128xf32>
    %cst_4 = arith.constant 1.000000e+00 : f32
    %12 = vector.broadcast %cst_4 : f32 to vector<32x128xf32>
    %13 = arith.subf %11, %12 : vector<32x128xf32>
    %14 = arith.mulf %9, %10 : vector<32x128xf32>
    %15 = arith.subf %14, %6 : vector<32x128xf32>
    %16 = arith.mulf %9, %13 : vector<32x128xf32>
    %17 = arith.subf %16, %7 : vector<32x128xf32>
    %18 = arith.mulf %9, %15 : vector<32x128xf32>
    %19 = arith.subf %18, %10 : vector<32x128xf32>
    %20 = arith.mulf %9, %17 : vector<32x128xf32>
    %21 = arith.subf %20, %13 : vector<32x128xf32>
    %22 = tpu.concatenate %6, %10, %15, %19, %7, %13, %17, %21 in 0 : vector<32x128xf32>, vector<32x128xf32>, vector<32x128xf32>, vector<32x128xf32>, vector<32x128xf32>, vector<32x128xf32>, vector<32x128xf32>, vector<32x128xf32> -> vector<256x128xf32>
    %c0_5 = arith.constant 0 : index
    %c0_6 = arith.constant 0 : index
    %23 = vector.load %arg3[%c0_5, %c0_6] : memref<32x256xf32, #tpu.memory_space<vmem>>, vector<32x256xf32>
    %cst_7 = arith.constant dense<0.000000e+00> : vector<32x128xf32>
    %24 = tpu.matmul %23, %22, %cst_7 {dimension_numbers = #tpu.dot_dimension_numbers<[1], [0], [0], [1], [0, 0, 1, 1], [], []>} : vector<32x256xf32>, vector<256x128xf32>, vector<32x128xf32> -> vector<32x128xf32>
    %c0_8 = arith.constant 0 : index
    %c0_9 = arith.constant 0 : index
    %25 = vector.load %arg4[%c0_8, %c0_9] : memref<32x1xf32, #tpu.memory_space<vmem>>, vector<32x1xf32>
    %26 = vector.broadcast %25 : vector<32x1xf32> to vector<32x128xf32>
    %27 = arith.addf %24, %26 : vector<32x128xf32>
    %c0_10 = arith.constant 0 : index
    %c0_11 = arith.constant 0 : index
    %28 = vector.load %arg5[%c0_10, %c0_11] : memref<32x128xf32, #tpu.memory_space<vmem>>, vector<32x128xf32>
    tpu.vector_store %arg5[%c0_10, %c0_11], %27 {strides = array<i32>} : memref<32x128xf32, #tpu.memory_space<vmem>>, vector<32x128xf32>,
    return
  }
  func.func @transform_0(%arg0: i32) -> (i32, i32, i32) {
    %c0_i32 = arith.constant 0 : i32
    %c0_i32_0 = arith.constant 0 : i32
    %c0_i32_1 = arith.constant 0 : i32
    return %arg0, %c0_i32, %c0_i32_0 : i32, i32, i32
  }
  func.func @transform_1(%arg0: i32) -> (i32, i32) {
    %c0_i32 = arith.constant 0 : i32
    %c0_i32_0 = arith.constant 0 : i32
    %c0_i32_1 = arith.constant 0 : i32
    return %c0_i32, %c0_i32_0 : i32, i32
  }
  func.func @transform_2(%arg0: i32) -> (i32, i32) {
    %c0_i32 = arith.constant 0 : i32
    %c0_i32_0 = arith.constant 0 : i32
    %c0_i32_1 = arith.constant 0 : i32
    return %c0_i32, %c0_i32_0 : i32, i32
  }
  func.func @transform_3(%arg0: i32) -> (i32, i32) {
    %c0_i32 = arith.constant 0 : i32
    %c0_i32_0 = arith.constant 0 : i32
    %c0_i32_1 = arith.constant 0 : i32
    return %c0_i32, %c0_i32_0 : i32, i32
  }
  func.func @transform_4(%arg0: i32) -> (i32, i32) {
    %c0_i32 = arith.constant 0 : i32
    %c0_i32_0 = arith.constant 0 : i32
    return %c0_i32, %arg0 : i32, i32
  }
}

</mosaic_0001>

<llo_original>
// kernel: tpu_custom_call.1
$region0: #{tpu_custom_call.1}
  #allocation0 [shape = 'u32[]', space=smem, size = 0x4, offset = 0x4, fixed_abs, tag = 'smem constant byte address 0x4 - core index']
  #allocation1 [shape = 'u32[144,128]{1,0:T(1,128)}', space=vmem, size = 0x12000, scoped, tag = 'internal scratch']
  %s0 = inlined_call_operand.vmem [shape: f32[1,1,128], index: 0, kind: input, shape index: {}]
  %s1 = inlined_call_operand.vmem [shape: f32[32,1], index: 1, kind: input, shape index: {}]
  %s2 = inlined_call_operand.vmem [shape: f32[32,256], index: 2, kind: input, shape index: {}]
  %s3 = inlined_call_operand.vmem [shape: f32[32,1], index: 3, kind: input, shape index: {}]
  %s4 = inlined_call_operand.hbm [shape: f32[32,128], index: 4, kind: output, shape index: {}]
  %s5 = sld [smem:[#allocation0]]
  $region26: #{tpu_custom_call.1} parent=0
    _
  %s7 = ssub.s32 1, %s5
  %s8 = scalar_select 0, %s7, %s5
  $region1: #{tpu_custom_call.1} parent=0
    #allocation2 [shape = 'u8[16384]{0}', space=vmem, size = 0x4000, scoped, tag = 'output window, operand 0, single buffered']
    #allocation3 [shape = 's32[1]{0}', space=sflag, size = 0x4, scoped, tag = 'scoped memory for tpu_custom_call.1']
    %9 = vsyncpa [#allocation3], 0
    // Predicated region
    $region2: #{tpu_custom_call.1} parent=1 // pred_check
      _
    $region3: #{tpu_custom_call.1} parent=1 // pred_check_branch
      %11 = sbr.rel (0) target = $region5
    $region4: #{tpu_custom_call.1} parent=1 // pred_region
      _
    $region5: #{tpu_custom_call.1} parent=1 // pred_fallthru
      _
    // Predicated region
    $region6: #{tpu_custom_call.1} parent=1 // pred_check
      _
    $region7: #{tpu_custom_call.1} parent=1 // pred_check_branch
      %13 = sbr.rel (0) target = $region9
    $region8: #{tpu_custom_call.1} parent=1 // pred_region
      _
    $region9: #{tpu_custom_call.1} parent=1 // pred_fallthru
      _
    // Predicated region
    $region10: #{tpu_custom_call.1} parent=1 // pred_check
      _
    $region11: #{tpu_custom_call.1} parent=1 // pred_check_branch
      %15 = sbr.rel (0) target = $region13
    $region12: #{tpu_custom_call.1} parent=1 // pred_region
      _
    $region13: #{tpu_custom_call.1} parent=1 // pred_fallthru
      _
    // Predicated region
    $region14: #{tpu_custom_call.1} parent=1 // pred_check
      _
    $region15: #{tpu_custom_call.1} parent=1 // pred_check_branch
      %17 = sbr.rel (0) target = $region17
    $region16: #{tpu_custom_call.1} parent=1 // pred_region
      _
    $region17: #{tpu_custom_call.1} parent=1 // pred_fallthru
      _
    %v18 = vld [vmem:[%s0] sm:$0x1]
    %v19 = vld [vmem:[%s1] sm:$0xff]
    %v20 = vld [vmem:[%s1 + $0x8] sm:$0xff]
    %v21 = vld [vmem:[%s1 + $0x10] sm:$0xff]
    %v22 = vld [vmem:[%s1 + $0x18] sm:$0xff]
    %24 = vset.pattern.permute.xlu0 0
    %25 = vperm.xlu0 %24, %v19
    %v26 = vpop.permute.xlu0 %25
    %29 = vset.pattern.permute.xlu0 0
    %30 = vperm.xlu0 %29, %v20
    %v31 = vpop.permute.xlu0 %30
    %34 = vset.pattern.permute.xlu0 0
    %35 = vperm.xlu0 %34, %v21
    %v36 = vpop.permute.xlu0 %35
    %39 = vset.pattern.permute.xlu0 0
    %40 = vperm.xlu0 %39, %v22
    %v41 = vpop.permute.xlu0 %40
    %v44 = vlaneseq
    %v45 = vshrl.u32 %v44, 7
    %v46 = vsub.s32 0, %v45
    %v47 = vrot.slane %v18, %v46
    %v49 = vmul.f32 %v26, %v47
    %v50 = vmul.f32 %v31, %v47
    %v51 = vmul.f32 %v36, %v47
    %v52 = vmul.f32 %v41, %v47
    %v53 = vand.u32 2147483647, %v49
    %vm54 = vcmp.le.f32.partialorder %v53, 0.7853982
    %vm55 = vcmp.lt.s32.totalorder %v49, 0
    %v56 = vand.u32 %v49, 2139095040
    %v57 = vshrl.u32 %v56, 23
    %v58 = vsub.s32 %v57, 127
    %v59 = vand.u32 2147483647, %v49
    %v60 = vand.u32 %v59, 8388607
    %v61 = vor.u32 %v60, 8388608
    %v62 = vsub.s32 0, %v61
    %v63 = vadd.s32 %v58, 1
    %vm64 = vcmp.gt.s32.totalorder %v63, 0
    %v65 = vsel %vm64, %v63, 0
    %v66 = vshrl.u32 %v65, 5
    %v67 = vand.u32 %v65, 31
    %v68 = vsub.s32 32, %v67
    %v69 = vshrl.u32 683565275, %v68
    %v70 = vshll.u32 683565275, %v67
    %v71 = vshrl.u32 2475754826, %v68
    %v72 = vor.u32 %v70, %v71
    %v73 = vshll.u32 2475754826, %v67
    %v74 = vshrl.u32 2131351028, %v68
    %v75 = vor.u32 %v73, %v74
    %v76 = vshll.u32 2131351028, %v67
    %v77 = vshrl.u32 2102212464, %v68
    %v78 = vor.u32 %v76, %v77
    %v79 = vshll.u32 2102212464, %v67
    %v80 = vshrl.u32 920167782, %v68
    %v81 = vor.u32 %v79, %v80
    %v82 = vshll.u32 920167782, %v67
    %v83 = vshrl.u32 1326507024, %v68
    %v84 = vor.u32 %v82, %v83
    %vm85 = vcmp.lt.s32.totalorder %v66, 1
    %vm86 = vcmp.lt.s32.totalorder %v66, 2
    %vm87 = vcmp.lt.s32.totalorder %v66, 3
    %vm88 = vcmp.lt.s32.totalorder %v66, 4
    %v89 = vsel %vm85, %v69, %v72
    %v90 = vsel %vm88, %v78, 2102212464
    %v91 = vsel %vm87, %v75, %v90
    %v92 = vsel %vm86, %v89, %v91
    %v93 = vsel %vm85, %v72, %v75
    %v94 = vsel %vm88, %v81, 920167782
    %v95 = vsel %vm87, %v78, %v94
    %v96 = vsel %vm86, %v93, %v95
    %v97 = vsel %vm85, %v75, %v78
    %v98 = vsel %vm88, %v84, 1326507024
    %v99 = vsel %vm87, %v81, %v98
    %v100 = vsel %vm86, %v97, %v99
    %v101 = vshll.u32 %v61, 8
    %v102 = vmul.u32.u64.compose %v101, %v100
    %v103 = vextract.low.u32 %v102
    %v104 = vextract.high.u32 %v102
    %v105 = vmul.u32.u64.compose %v101, %v96
    %v106 = vextract.low.u32 %v105
    %v107 = vextract.high.u32 %v105
    %v108 = vmul.u32 %v101, %v92
    %v109 = vadd.s32 %v104, %v106
    %vm110 = vc.u32 %v104, %v106
    %v111 = vadd.s32 %v107, 1
    %v112 = vsel %vm110, %v111, %v107
    %v113 = vadd.s32 %v108, %v112
    %v114 = vadd.s32 %v113, 536870912
    %v115 = vshrl.u32 %v114, 30
    %v116 = vshll.u32 %v115, 30
    %v117 = vsub.s32 %v113, %v116
    %vm118 = vcmp.lt.s32.totalorder %v117, 0
    %v119 = vsub.s32 0, %v117
    %v120 = vsel %vm118, %v119, %v117
    %v121 = vclz %v120
    %v122 = vsub.s32 %v121, 2
    %vm123 = vcmp.gt.s32.totalorder 0, %v122
    %v124 = vsel %vm123, 0, %v122
    %v125 = vsub.s32 32, %v124
    %v126 = vshll.u32 %v117, %v124
    %v127 = vshrl.u32 %v109, %v125
    %v128 = vor.u32 %v126, %v127
    %v129 = vsub.s32 4294967266, %v124
    %v130 = vadd.s32 %v129, 127
    %v131 = vshll.u32 %v130, 23
    %v132 = vor.u32 4788187, %v131
    %v133 = vand.u32 2147483647, %v132
    %v135 = vcvt.s32.f32 %v128
    %v136 = vmul.f32 %v135, %v133
    %v137 = vxor.u32 %v136, 2147483648
    %v138 = vsel %vm55, %v137, %v136
    %v139 = vsub.s32 4, %v115
    %v140 = vsel %vm55, %v139, %v115
    %v141 = vsel %vm54, %v49, %v138
    %v142 = vsel %vm54, 0, %v140
    %v143 = vcosq.f32.pop %v141
    %v144 = vsinq.f32.pop %v141
    %vm145 = vweird.f32 %v49
    %v146 = vadd.s32 %v142, 3
    %v147 = vand.u32 %v146, 3
    %vm148 = vcmp.lt.s32.totalorder %v147, 2
    %vm149 = vcmp.eq.s32.totalorder %v147, 0
    %v150 = vxor.u32 %v144, 2147483648
    %v151 = vsel %vm149, %v143, %v150
    %vm152 = vcmp.eq.s32.totalorder %v147, 2
    %v153 = vxor.u32 %v143, 2147483648
    %v154 = vsel %vm152, %v153, %v144
    %v155 = vsel %vm148, %v151, %v154
    %v156 = vsel %vm145, nan, %v155
    %v157 = vand.u32 2147483647, %v50
    %vm158 = vcmp.le.f32.partialorder %v157, 0.7853982
    %vm159 = vcmp.lt.s32.totalorder %v50, 0
    %v160 = vand.u32 %v50, 2139095040
    %v161 = vshrl.u32 %v160, 23
    %v162 = vsub.s32 %v161, 127
    %v163 = vand.u32 2147483647, %v50
    %v164 = vand.u32 %v163, 8388607
    %v165 = vor.u32 %v164, 8388608
    %v166 = vsub.s32 0, %v165
    %v167 = vadd.s32 %v162, 1
    %vm168 = vcmp.gt.s32.totalorder %v167, 0
    %v169 = vsel %vm168, %v167, 0
    %v170 = vshrl.u32 %v169, 5
    %v171 = vand.u32 %v169, 31
    %v172 = vsub.s32 32, %v171
    %v173 = vshrl.u32 683565275, %v172
    %v174 = vshll.u32 683565275, %v171
    %v175 = vshrl.u32 2475754826, %v172
    %v176 = vor.u32 %v174, %v175
    %v177 = vshll.u32 2475754826, %v171
    %v178 = vshrl.u32 2131351028, %v172
    %v179 = vor.u32 %v177, %v178
    %v180 = vshll.u32 2131351028, %v171
    %v181 = vshrl.u32 2102212464, %v172
    %v182 = vor.u32 %v180, %v181
    %v183 = vshll.u32 2102212464, %v171
    %v184 = vshrl.u32 920167782, %v172
    %v185 = vor.u32 %v183, %v184
    %v186 = vshll.u32 920167782, %v171
    %v187 = vshrl.u32 1326507024, %v172
    %v188 = vor.u32 %v186, %v187
    %vm189 = vcmp.lt.s32.totalorder %v170, 1
    %vm190 = vcmp.lt.s32.totalorder %v170, 2
    %vm191 = vcmp.lt.s32.totalorder %v170, 3
    %vm192 = vcmp.lt.s32.totalorder %v170, 4
    %v193 = vsel %vm189, %v173, %v176
    %v194 = vsel %vm192, %v182, 2102212464
    %v195 = vsel %vm191, %v179, %v194
    %v196 = vsel %vm190, %v193, %v195
    %v197 = vsel %vm189, %v176, %v179
    %v198 = vsel %vm192, %v185, 920167782
    %v199 = vsel %vm191, %v182, %v198
    %v200 = vsel %vm190, %v197, %v199
    %v201 = vsel %vm189, %v179, %v182
    %v202 = vsel %vm192, %v188, 1326507024
    %v203 = vsel %vm191, %v185, %v202
    %v204 = vsel %vm190, %v201, %v203
    %v205 = vshll.u32 %v165, 8
    %v206 = vmul.u32.u64.compose %v205, %v204
    %v207 = vextract.low.u32 %v206
    %v208 = vextract.high.u32 %v206
    %v209 = vmul.u32.u64.compose %v205, %v200
    %v210 = vextract.low.u32 %v209
    %v211 = vextract.high.u32 %v209
    %v212 = vmul.u32 %v205, %v196
    %v213 = vadd.s32 %v208, %v210
    %vm214 = vc.u32 %v208, %v210
    %v215 = vadd.s32 %v211, 1
    %v216 = vsel %vm214, %v215, %v211
    %v217 = vadd.s32 %v212, %v216
    %v218 = vadd.s32 %v217, 536870912
    %v219 = vshrl.u32 %v218, 30
    %v220 = vshll.u32 %v219, 30
    %v221 = vsub.s32 %v217, %v220
    %vm222 = vcmp.lt.s32.totalorder %v221, 0
    %v223 = vsub.s32 0, %v221
    %v224 = vsel %vm222, %v223, %v221
    %v225 = vclz %v224
    %v226 = vsub.s32 %v225, 2
    %vm227 = vcmp.gt.s32.totalorder 0, %v226
    %v228 = vsel %vm227, 0, %v226
    %v229 = vsub.s32 32, %v228
    %v230 = vshll.u32 %v221, %v228
    %v231 = vshrl.u32 %v213, %v229
    %v232 = vor.u32 %v230, %v231
    %v233 = vsub.s32 4294967266, %v228
    %v234 = vadd.s32 %v233, 127
    %v235 = vshll.u32 %v234, 23
    %v236 = vor.u32 4788187, %v235
    %v237 = vand.u32 2147483647, %v236
    %v239 = vcvt.s32.f32 %v232
    %v240 = vmul.f32 %v239, %v237
    %v241 = vxor.u32 %v240, 2147483648
    %v242 = vsel %vm159, %v241, %v240
    %v243 = vsub.s32 4, %v219
    %v244 = vsel %vm159, %v243, %v219
    %v245 = vsel %vm158, %v50, %v242
    %v246 = vsel %vm158, 0, %v244
    %v247 = vcosq.f32.pop %v245
    %v248 = vsinq.f32.pop %v245
    %vm249 = vweird.f32 %v50
    %v250 = vadd.s32 %v246, 3
    %v251 = vand.u32 %v250, 3
    %vm252 = vcmp.lt.s32.totalorder %v251, 2
    %vm253 = vcmp.eq.s32.totalorder %v251, 0
    %v254 = vxor.u32 %v248, 2147483648
    %v255 = vsel %vm253, %v247, %v254
    %vm256 = vcmp.eq.s32.totalorder %v251, 2
    %v257 = vxor.u32 %v247, 2147483648
    %v258 = vsel %vm256, %v257, %v248
    %v259 = vsel %vm252, %v255, %v258
    %v260 = vsel %vm249, nan, %v259
    %v261 = vand.u32 2147483647, %v51
    %vm262 = vcmp.le.f32.partialorder %v261, 0.7853982
    %vm263 = vcmp.lt.s32.totalorder %v51, 0
    %v264 = vand.u32 %v51, 2139095040
    %v265 = vshrl.u32 %v264, 23
    %v266 = vsub.s32 %v265, 127
    %v267 = vand.u32 2147483647, %v51
    %v268 = vand.u32 %v267, 8388607
    %v269 = vor.u32 %v268, 8388608
    %v270 = vsub.s32 0, %v269
    %v271 = vadd.s32 %v266, 1
    %vm272 = vcmp.gt.s32.totalorder %v271, 0
    %v273 = vsel %vm272, %v271, 0
    %v274 = vshrl.u32 %v273, 5
    %v275 = vand.u32 %v273, 31
    %v276 = vsub.s32 32, %v275
    %v277 = vshrl.u32 683565275, %v276
    %v278 = vshll.u32 683565275, %v275
    %v279 = vshrl.u32 2475754826, %v276
    %v280 = vor.u32 %v278, %v279
    %v281 = vshll.u32 2475754826, %v275
    %v282 = vshrl.u32 2131351028, %v276
    %v283 = vor.u32 %v281, %v282
    %v284 = vshll.u32 2131351028, %v275
    %v285 = vshrl.u32 2102212464, %v276
    %v286 = vor.u32 %v284, %v285
    %v287 = vshll.u32 2102212464, %v275
    %v288 = vshrl.u32 920167782, %v276
    %v289 = vor.u32 %v287, %v288
    %v290 = vshll.u32 920167782, %v275
    %v291 = vshrl.u32 1326507024, %v276
    %v292 = vor.u32 %v290, %v291
    %vm293 = vcmp.lt.s32.totalorder %v274, 1
    %vm294 = vcmp.lt.s32.totalorder %v274, 2
    %vm295 = vcmp.lt.s32.totalorder %v274, 3
    %vm296 = vcmp.lt.s32.totalorder %v274, 4
    %v297 = vsel %vm293, %v277, %v280
    %v298 = vsel %vm296, %v286, 2102212464
    %v299 = vsel %vm295, %v283, %v298
    %v300 = vsel %vm294, %v297, %v299
    %v301 = vsel %vm293, %v280, %v283
    %v302 = vsel %vm296, %v289, 920167782
    %v303 = vsel %vm295, %v286, %v302
    %v304 = vsel %vm294, %v301, %v303
    %v305 = vsel %vm293, %v283, %v286
    %v306 = vsel %vm296, %v292, 1326507024
    %v307 = vsel %vm295, %v289, %v306
    %v308 = vsel %vm294, %v305, %v307
    %v309 = vshll.u32 %v269, 8
    %v310 = vmul.u32.u64.compose %v309, %v308
    %v311 = vextract.low.u32 %v310
    %v312 = vextract.high.u32 %v310
    %v313 = vmul.u32.u64.compose %v309, %v304
    %v314 = vextract.low.u32 %v313
    %v315 = vextract.high.u32 %v313
    %v316 = vmul.u32 %v309, %v300
    %v317 = vadd.s32 %v312, %v314
    %vm318 = vc.u32 %v312, %v314
    %v319 = vadd.s32 %v315, 1
    %v320 = vsel %vm318, %v319, %v315
    %v321 = vadd.s32 %v316, %v320
    %v322 = vadd.s32 %v321, 536870912
    %v323 = vshrl.u32 %v322, 30
    %v324 = vshll.u32 %v323, 30
    %v325 = vsub.s32 %v321, %v324
    %vm326 = vcmp.lt.s32.totalorder %v325, 0
    %v327 = vsub.s32 0, %v325
    %v328 = vsel %vm326, %v327, %v325
    %v329 = vclz %v328
    %v330 = vsub.s32 %v329, 2
    %vm331 = vcmp.gt.s32.totalorder 0, %v330
    %v332 = vsel %vm331, 0, %v330
    %v333 = vsub.s32 32, %v332
    %v334 = vshll.u32 %v325, %v332
    %v335 = vshrl.u32 %v317, %v333
    %v336 = vor.u32 %v334, %v335
    %v337 = vsub.s32 4294967266, %v332
    %v338 = vadd.s32 %v337, 127
    %v339 = vshll.u32 %v338, 23
    %v340 = vor.u32 4788187, %v339
    %v341 = vand.u32 2147483647, %v340
    %v343 = vcvt.s32.f32 %v336
    %v344 = vmul.f32 %v343, %v341
    %v345 = vxor.u32 %v344, 2147483648
    %v346 = vsel %vm263, %v345, %v344
    %v347 = vsub.s32 4, %v323
    %v348 = vsel %vm263, %v347, %v323
    %v349 = vsel %vm262, %v51, %v346
    %v350 = vsel %vm262, 0, %v348
    %v351 = vcosq.f32.pop %v349
    %v352 = vsinq.f32.pop %v349
    %vm353 = vweird.f32 %v51
    %v354 = vadd.s32 %v350, 3
    %v355 = vand.u32 %v354, 3
    %vm356 = vcmp.lt.s32.totalorder %v355, 2
    %vm357 = vcmp.eq.s32.totalorder %v355, 0
    %v358 = vxor.u32 %v352, 2147483648
    %v359 = vsel %vm357, %v351, %v358
    %vm360 = vcmp.eq.s32.totalorder %v355, 2
    %v361 = vxor.u32 %v351, 2147483648
    %v362 = vsel %vm360, %v361, %v352
    %v363 = vsel %vm356, %v359, %v362
    %v364 = vsel %vm353, nan, %v363
    %v365 = vand.u32 2147483647, %v52
    %vm366 = vcmp.le.f32.partialorder %v365, 0.7853982
    %vm367 = vcmp.lt.s32.totalorder %v52, 0
    %v368 = vand.u32 %v52, 2139095040
    %v369 = vshrl.u32 %v368, 23
    %v370 = vsub.s32 %v369, 127
    %v371 = vand.u32 2147483647, %v52
    %v372 = vand.u32 %v371, 8388607
    %v373 = vor.u32 %v372, 8388608
    %v374 = vsub.s32 0, %v373
    %v375 = vadd.s32 %v370, 1
    %vm376 = vcmp.gt.s32.totalorder %v375, 0
    %v377 = vsel %vm376, %v375, 0
    %v378 = vshrl.u32 %v377, 5
    %v379 = vand.u32 %v377, 31
    %v380 = vsub.s32 32, %v379
    %v381 = vshrl.u32 683565275, %v380
    %v382 = vshll.u32 683565275, %v379
    %v383 = vshrl.u32 2475754826, %v380
    %v384 = vor.u32 %v382, %v383
    %v385 = vshll.u32 2475754826, %v379
    %v386 = vshrl.u32 2131351028, %v380
    %v387 = vor.u32 %v385, %v386
    %v388 = vshll.u32 2131351028, %v379
    %v389 = vshrl.u32 2102212464, %v380
    %v390 = vor.u32 %v388, %v389
    %v391 = vshll.u32 2102212464, %v379
    %v392 = vshrl.u32 920167782, %v380
    %v393 = vor.u32 %v391, %v392
    %v394 = vshll.u32 920167782, %v379
    %v395 = vshrl.u32 1326507024, %v380
    %v396 = vor.u32 %v394, %v395
    %vm397 = vcmp.lt.s32.totalorder %v378, 1
    %vm398 = vcmp.lt.s32.totalorder %v378, 2
    %vm399 = vcmp.lt.s32.totalorder %v378, 3
    %vm400 = vcmp.lt.s32.totalorder %v378, 4
    %v401 = vsel %vm397, %v381, %v384
    %v402 = vsel %vm400, %v390, 2102212464
    %v403 = vsel %vm399, %v387, %v402
    %v404 = vsel %vm398, %v401, %v403
    %v405 = vsel %vm397, %v384, %v387
    %v406 = vsel %vm400, %v393, 920167782
    %v407 = vsel %vm399, %v390, %v406
    %v408 = vsel %vm398, %v405, %v407
    %v409 = vsel %vm397, %v387, %v390
    %v410 = vsel %vm400, %v396, 1326507024
    %v411 = vsel %vm399, %v393, %v410
    %v412 = vsel %vm398, %v409, %v411
    %v413 = vshll.u32 %v373, 8
    %v414 = vmul.u32.u64.compose %v413, %v412
    %v415 = vextract.low.u32 %v414
    %v416 = vextract.high.u32 %v414
    %v417 = vmul.u32.u64.compose %v413, %v408
    %v418 = vextract.low.u32 %v417
    %v419 = vextract.high.u32 %v417
    %v420 = vmul.u32 %v413, %v404
    %v421 = vadd.s32 %v416, %v418
    %vm422 = vc.u32 %v416, %v418
    %v423 = vadd.s32 %v419, 1
    %v424 = vsel %vm422, %v423, %v419
    %v425 = vadd.s32 %v420, %v424
    %v426 = vadd.s32 %v425, 536870912
    %v427 = vshrl.u32 %v426, 30
    %v428 = vshll.u32 %v427, 30
    %v429 = vsub.s32 %v425, %v428
    %vm430 = vcmp.lt.s32.totalorder %v429, 0
    %v431 = vsub.s32 0, %v429
    %v432 = vsel %vm430, %v431, %v429
    %v433 = vclz %v432
    %v434 = vsub.s32 %v433, 2
    %vm435 = vcmp.gt.s32.totalorder 0, %v434
    %v436 = vsel %vm435, 0, %v434
    %v437 = vsub.s32 32, %v436
    %v438 = vshll.u32 %v429, %v436
    %v439 = vshrl.u32 %v421, %v437
    %v440 = vor.u32 %v438, %v439
    %v441 = vsub.s32 4294967266, %v436
    %v442 = vadd.s32 %v441, 127
    %v443 = vshll.u32 %v442, 23
    %v444 = vor.u32 4788187, %v443
    %v445 = vand.u32 2147483647, %v444
    %v447 = vcvt.s32.f32 %v440
    %v448 = vmul.f32 %v447, %v445
    %v449 = vxor.u32 %v448, 2147483648
    %v450 = vsel %vm367, %v449, %v448
    %v451 = vsub.s32 4, %v427
    %v452 = vsel %vm367, %v451, %v427
    %v453 = vsel %vm366, %v52, %v450
    %v454 = vsel %vm366, 0, %v452
    %v455 = vcosq.f32.pop %v453
    %v456 = vsinq.f32.pop %v453
    %vm457 = vweird.f32 %v52
    %v458 = vadd.s32 %v454, 3
    %v459 = vand.u32 %v458, 3
    %vm460 = vcmp.lt.s32.totalorder %v459, 2
    %vm461 = vcmp.eq.s32.totalorder %v459, 0
    %v462 = vxor.u32 %v456, 2147483648
    %v463 = vsel %vm461, %v455, %v462
    %vm464 = vcmp.eq.s32.totalorder %v459, 2
    %v465 = vxor.u32 %v455, 2147483648
    %v466 = vsel %vm464, %v465, %v456
    %v467 = vsel %vm460, %v463, %v466
    %v468 = vsel %vm457, nan, %v467
    %v469 = vand.u32 2147483647, %v49
    %vm470 = vcmp.le.f32.partialorder %v469, 0.7853982
    %vm471 = vcmp.lt.s32.totalorder %v49, 0
    %v472 = vand.u32 %v49, 2139095040
    %v473 = vshrl.u32 %v472, 23
    %v474 = vsub.s32 %v473, 127
    %v475 = vand.u32 2147483647, %v49
    %v476 = vand.u32 %v475, 8388607
    %v477 = vor.u32 %v476, 8388608
    %v478 = vsub.s32 0, %v477
    %v479 = vadd.s32 %v474, 1
    %vm480 = vcmp.gt.s32.totalorder %v479, 0
    %v481 = vsel %vm480, %v479, 0
    %v482 = vshrl.u32 %v481, 5
    %v483 = vand.u32 %v481, 31
    %v484 = vsub.s32 32, %v483
    %v485 = vshrl.u32 683565275, %v484
    %v486 = vshll.u32 683565275, %v483
    %v487 = vshrl.u32 2475754826, %v484
    %v488 = vor.u32 %v486, %v487
    %v489 = vshll.u32 2475754826, %v483
    %v490 = vshrl.u32 2131351028, %v484
    %v491 = vor.u32 %v489, %v490
    %v492 = vshll.u32 2131351028, %v483
    %v493 = vshrl.u32 2102212464, %v484
    %v494 = vor.u32 %v492, %v493
    %v495 = vshll.u32 2102212464, %v483
    %v496 = vshrl.u32 920167782, %v484
    %v497 = vor.u32 %v495, %v496
    %v498 = vshll.u32 920167782, %v483
    %v499 = vshrl.u32 1326507024, %v484
    %v500 = vor.u32 %v498, %v499
    %vm501 = vcmp.lt.s32.totalorder %v482, 1
    %vm502 = vcmp.lt.s32.totalorder %v482, 2
    %vm503 = vcmp.lt.s32.totalorder %v482, 3
    %vm504 = vcmp.lt.s32.totalorder %v482, 4
    %v505 = vsel %vm501, %v485, %v488
    %v506 = vsel %vm504, %v494, 2102212464
    %v507 = vsel %vm503, %v491, %v506
    %v508 = vsel %vm502, %v505, %v507
    %v509 = vsel %vm501, %v488, %v491
    %v510 = vsel %vm504, %v497, 920167782
    %v511 = vsel %vm503, %v494, %v510
    %v512 = vsel %vm502, %v509, %v511
    %v513 = vsel %vm501, %v491, %v494
    %v514 = vsel %vm504, %v500, 1326507024
    %v515 = vsel %vm503, %v497, %v514
    %v516 = vsel %vm502, %v513, %v515
    %v517 = vshll.u32 %v477, 8
    %v518 = vmul.u32.u64.compose %v517, %v516
    %v519 = vextract.low.u32 %v518
    %v520 = vextract.high.u32 %v518
    %v521 = vmul.u32.u64.compose %v517, %v512
    %v522 = vextract.low.u32 %v521
    %v523 = vextract.high.u32 %v521
    %v524 = vmul.u32 %v517, %v508
    %v525 = vadd.s32 %v520, %v522
    %vm526 = vc.u32 %v520, %v522
    %v527 = vadd.s32 %v523, 1
    %v528 = vsel %vm526, %v527, %v523
    %v529 = vadd.s32 %v524, %v528
    %v530 = vadd.s32 %v529, 536870912
    %v531 = vshrl.u32 %v530, 30
    %v532 = vshll.u32 %v531, 30
    %v533 = vsub.s32 %v529, %v532
    %vm534 = vcmp.lt.s32.totalorder %v533, 0
    %v535 = vsub.s32 0, %v533
    %v536 = vsel %vm534, %v535, %v533
    %v537 = vclz %v536
    %v538 = vsub.s32 %v537, 2
    %vm539 = vcmp.gt.s32.totalorder 0, %v538
    %v540 = vsel %vm539, 0, %v538
    %v541 = vsub.s32 32, %v540
    %v542 = vshll.u32 %v533, %v540
    %v543 = vshrl.u32 %v525, %v541
    %v544 = vor.u32 %v542, %v543
    %v545 = vsub.s32 4294967266, %v540
    %v546 = vadd.s32 %v545, 127
    %v547 = vshll.u32 %v546, 23
    %v548 = vor.u32 4788187, %v547
    %v549 = vand.u32 2147483647, %v548
    %v551 = vcvt.s32.f32 %v544
    %v552 = vmul.f32 %v551, %v549
    %v553 = vxor.u32 %v552, 2147483648
    %v554 = vsel %vm471, %v553, %v552
    %v555 = vsub.s32 4, %v531
    %v556 = vsel %vm471, %v555, %v531
    %v557 = vsel %vm470, %v49, %v554
    %v558 = vsel %vm470, 0, %v556
    %v559 = vcosq.f32.pop %v557
    %v560 = vsinq.f32.pop %v557
    %vm561 = vweird.f32 %v49
    %v562 = vand.u32 %v558, 3
    %vm563 = vcmp.lt.s32.totalorder %v562, 2
    %vm564 = vcmp.eq.s32.totalorder %v562, 0
    %v565 = vxor.u32 %v560, 2147483648
    %v566 = vsel %vm564, %v559, %v565
    %vm567 = vcmp.eq.s32.totalorder %v562, 2
    %v568 = vxor.u32 %v559, 2147483648
    %v569 = vsel %vm567, %v568, %v560
    %v570 = vsel %vm563, %v566, %v569
    %v571 = vsel %vm561, nan, %v570
    %v572 = vand.u32 2147483647, %v50
    %vm573 = vcmp.le.f32.partialorder %v572, 0.7853982
    %vm574 = vcmp.lt.s32.totalorder %v50, 0
    %v575 = vand.u32 %v50, 2139095040
    %v576 = vshrl.u32 %v575, 23
    %v577 = vsub.s32 %v576, 127
    %v578 = vand.u32 2147483647, %v50
    %v579 = vand.u32 %v578, 8388607
    %v580 = vor.u32 %v579, 8388608
    %v581 = vsub.s32 0, %v580
    %v582 = vadd.s32 %v577, 1
    %vm583 = vcmp.gt.s32.totalorder %v582, 0
    %v584 = vsel %vm583, %v582, 0
    %v585 = vshrl.u32 %v584, 5
    %v586 = vand.u32 %v584, 31
    %v587 = vsub.s32 32, %v586
    %v588 = vshrl.u32 683565275, %v587
    %v589 = vshll.u32 683565275, %v586
    %v590 = vshrl.u32 2475754826, %v587
    %v591 = vor.u32 %v589, %v590
    %v592 = vshll.u32 2475754826, %v586
    %v593 = vshrl.u32 2131351028, %v587
    %v594 = vor.u32 %v592, %v593
    %v595 = vshll.u32 2131351028, %v586
    %v596 = vshrl.u32 2102212464, %v587
    %v597 = vor.u32 %v595, %v596
    %v598 = vshll.u32 2102212464, %v586
    %v599 = vshrl.u32 920167782, %v587
    %v600 = vor.u32 %v598, %v599
    %v601 = vshll.u32 920167782, %v586
    %v602 = vshrl.u32 1326507024, %v587
    %v603 = vor.u32 %v601, %v602
    %vm604 = vcmp.lt.s32.totalorder %v585, 1
    %vm605 = vcmp.lt.s32.totalorder %v585, 2
    %vm606 = vcmp.lt.s32.totalorder %v585, 3
    %vm607 = vcmp.lt.s32.totalorder %v585, 4
    %v608 = vsel %vm604, %v588, %v591
    %v609 = vsel %vm607, %v597, 2102212464
    %v610 = vsel %vm606, %v594, %v609
    %v611 = vsel %vm605, %v608, %v610
    %v612 = vsel %vm604, %v591, %v594
    %v613 = vsel %vm607, %v600, 920167782
    %v614 = vsel %vm606, %v597, %v613
    %v615 = vsel %vm605, %v612, %v614
    %v616 = vsel %vm604, %v594, %v597
    %v617 = vsel %vm607, %v603, 1326507024
    %v618 = vsel %vm606, %v600, %v617
    %v619 = vsel %vm605, %v616, %v618
    %v620 = vshll.u32 %v580, 8
    %v621 = vmul.u32.u64.compose %v620, %v619
    %v622 = vextract.low.u32 %v621
    %v623 = vextract.high.u32 %v621
    %v624 = vmul.u32.u64.compose %v620, %v615
    %v625 = vextract.low.u32 %v624
    %v626 = vextract.high.u32 %v624
    %v627 = vmul.u32 %v620, %v611
    %v628 = vadd.s32 %v623, %v625
    %vm629 = vc.u32 %v623, %v625
    %v630 = vadd.s32 %v626, 1
    %v631 = vsel %vm629, %v630, %v626
    %v632 = vadd.s32 %v627, %v631
    %v633 = vadd.s32 %v632, 536870912
    %v634 = vshrl.u32 %v633, 30
    %v635 = vshll.u32 %v634, 30
    %v636 = vsub.s32 %v632, %v635
    %vm637 = vcmp.lt.s32.totalorder %v636, 0
    %v638 = vsub.s32 0, %v636
    %v639 = vsel %vm637, %v638, %v636
    %v640 = vclz %v639
    %v641 = vsub.s32 %v640, 2
    %vm642 = vcmp.gt.s32.totalorder 0, %v641
    %v643 = vsel %vm642, 0, %v641
    %v644 = vsub.s32 32, %v643
    %v645 = vshll.u32 %v636, %v643
    %v646 = vshrl.u32 %v628, %v644
    %v647 = vor.u32 %v645, %v646
    %v648 = vsub.s32 4294967266, %v643
    %v649 = vadd.s32 %v648, 127
    %v650 = vshll.u32 %v649, 23
    %v651 = vor.u32 4788187, %v650
    %v652 = vand.u32 2147483647, %v651
    %v654 = vcvt.s32.f32 %v647
    %v655 = vmul.f32 %v654, %v652
    %v656 = vxor.u32 %v655, 2147483648
    %v657 = vsel %vm574, %v656, %v655
    %v658 = vsub.s32 4, %v634
    %v659 = vsel %vm574, %v658, %v634
    %v660 = vsel %vm573, %v50, %v657
    %v661 = vsel %vm573, 0, %v659
    %v662 = vcosq.f32.pop %v660
    %v663 = vsinq.f32.pop %v660
    %vm664 = vweird.f32 %v50
    %v665 = vand.u32 %v661, 3
    %vm666 = vcmp.lt.s32.totalorder %v665, 2
    %vm667 = vcmp.eq.s32.totalorder %v665, 0
    %v668 = vxor.u32 %v663, 2147483648
    %v669 = vsel %vm667, %v662, %v668
    %vm670 = vcmp.eq.s32.totalorder %v665, 2
    %v671 = vxor.u32 %v662, 2147483648
    %v672 = vsel %vm670, %v671, %v663
    %v673 = vsel %vm666, %v669, %v672
    %v674 = vsel %vm664, nan, %v673
    %v675 = vand.u32 2147483647, %v51
    %vm676 = vcmp.le.f32.partialorder %v675, 0.7853982
    %vm677 = vcmp.lt.s32.totalorder %v51, 0
    %v678 = vand.u32 %v51, 2139095040
    %v679 = vshrl.u32 %v678, 23
    %v680 = vsub.s32 %v679, 127
    %v681 = vand.u32 2147483647, %v51
    %v682 = vand.u32 %v681, 8388607
    %v683 = vor.u32 %v682, 8388608
    %v684 = vsub.s32 0, %v683
    %v685 = vadd.s32 %v680, 1
    %vm686 = vcmp.gt.s32.totalorder %v685, 0
    %v687 = vsel %vm686, %v685, 0
    %v688 = vshrl.u32 %v687, 5
    %v689 = vand.u32 %v687, 31
    %v690 = vsub.s32 32, %v689
    %v691 = vshrl.u32 683565275, %v690
    %v692 = vshll.u32 683565275, %v689
    %v693 = vshrl.u32 2475754826, %v690
    %v694 = vor.u32 %v692, %v693
    %v695 = vshll.u32 2475754826, %v689
    %v696 = vshrl.u32 2131351028, %v690
    %v697 = vor.u32 %v695, %v696
    %v698 = vshll.u32 2131351028, %v689
    %v699 = vshrl.u32 2102212464, %v690
    %v700 = vor.u32 %v698, %v699
    %v701 = vshll.u32 2102212464, %v689
    %v702 = vshrl.u32 920167782, %v690
    %v703 = vor.u32 %v701, %v702
    %v704 = vshll.u32 920167782, %v689
    %v705 = vshrl.u32 1326507024, %v690
    %v706 = vor.u32 %v704, %v705
    %vm707 = vcmp.lt.s32.totalorder %v688, 1
    %vm708 = vcmp.lt.s32.totalorder %v688, 2
    %vm709 = vcmp.lt.s32.totalorder %v688, 3
    %vm710 = vcmp.lt.s32.totalorder %v688, 4
    %v711 = vsel %vm707, %v691, %v694
    %v712 = vsel %vm710, %v700, 2102212464
    %v713 = vsel %vm709, %v697, %v712
    %v714 = vsel %vm708, %v711, %v713
    %v715 = vsel %vm707, %v694, %v697
    %v716 = vsel %vm710, %v703, 920167782
    %v717 = vsel %vm709, %v700, %v716
    %v718 = vsel %vm708, %v715, %v717
    %v719 = vsel %vm707, %v697, %v700
    %v720 = vsel %vm710, %v706, 1326507024
    %v721 = vsel %vm709, %v703, %v720
    %v722 = vsel %vm708, %v719, %v721
    %v723 = vshll.u32 %v683, 8
    %v724 = vmul.u32.u64.compose %v723, %v722
    %v725 = vextract.low.u32 %v724
    %v726 = vextract.high.u32 %v724
    %v727 = vmul.u32.u64.compose %v723, %v718
    %v728 = vextract.low.u32 %v727
    %v729 = vextract.high.u32 %v727
    %v730 = vmul.u32 %v723, %v714
    %v731 = vadd.s32 %v726, %v728
    %vm732 = vc.u32 %v726, %v728
    %v733 = vadd.s32 %v729, 1
    %v734 = vsel %vm732, %v733, %v729
    %v735 = vadd.s32 %v730, %v734
    %v736 = vadd.s32 %v735, 536870912
    %v737 = vshrl.u32 %v736, 30
    %v738 = vshll.u32 %v737, 30
    %v739 = vsub.s32 %v735, %v738
    %vm740 = vcmp.lt.s32.totalorder %v739, 0
    %v741 = vsub.s32 0, %v739
    %v742 = vsel %vm740, %v741, %v739
    %v743 = vclz %v742
    %v744 = vsub.s32 %v743, 2
    %vm745 = vcmp.gt.s32.totalorder 0, %v744
    %v746 = vsel %vm745, 0, %v744
    %v747 = vsub.s32 32, %v746
    %v748 = vshll.u32 %v739, %v746
    %v749 = vshrl.u32 %v731, %v747
    %v750 = vor.u32 %v748, %v749
    %v751 = vsub.s32 4294967266, %v746
    %v752 = vadd.s32 %v751, 127
    %v753 = vshll.u32 %v752, 23
    %v754 = vor.u32 4788187, %v753
    %v755 = vand.u32 2147483647, %v754
    %v757 = vcvt.s32.f32 %v750
    %v758 = vmul.f32 %v757, %v755
    %v759 = vxor.u32 %v758, 2147483648
    %v760 = vsel %vm677, %v759, %v758
    %v761 = vsub.s32 4, %v737
    %v762 = vsel %vm677, %v761, %v737
    %v763 = vsel %vm676, %v51, %v760
    %v764 = vsel %vm676, 0, %v762
    %v765 = vcosq.f32.pop %v763
    %v766 = vsinq.f32.pop %v763
    %vm767 = vweird.f32 %v51
    %v768 = vand.u32 %v764, 3
    %vm769 = vcmp.lt.s32.totalorder %v768, 2
    %vm770 = vcmp.eq.s32.totalorder %v768, 0
    %v771 = vxor.u32 %v766, 2147483648
    %v772 = vsel %vm770, %v765, %v771
    %vm773 = vcmp.eq.s32.totalorder %v768, 2
    %v774 = vxor.u32 %v765, 2147483648
    %v775 = vsel %vm773, %v774, %v766
    %v776 = vsel %vm769, %v772, %v775
    %v777 = vsel %vm767, nan, %v776
    %v778 = vand.u32 2147483647, %v52
    %vm779 = vcmp.le.f32.partialorder %v778, 0.7853982
    %vm780 = vcmp.lt.s32.totalorder %v52, 0
    %v781 = vand.u32 %v52, 2139095040
    %v782 = vshrl.u32 %v781, 23
    %v783 = vsub.s32 %v782, 127
    %v784 = vand.u32 2147483647, %v52
    %v785 = vand.u32 %v784, 8388607
    %v786 = vor.u32 %v785, 8388608
    %v787 = vsub.s32 0, %v786
    %v788 = vadd.s32 %v783, 1
    %vm789 = vcmp.gt.s32.totalorder %v788, 0
    %v790 = vsel %vm789, %v788, 0
    %v791 = vshrl.u32 %v790, 5
    %v792 = vand.u32 %v790, 31
    %v793 = vsub.s32 32, %v792
    %v794 = vshrl.u32 683565275, %v793
    %v795 = vshll.u32 683565275, %v792
    %v796 = vshrl.u32 2475754826, %v793
    %v797 = vor.u32 %v795, %v796
    %v798 = vshll.u32 2475754826, %v792
    %v799 = vshrl.u32 2131351028, %v793
    %v800 = vor.u32 %v798, %v799
    %v801 = vshll.u32 2131351028, %v792
    %v802 = vshrl.u32 2102212464, %v793
    %v803 = vor.u32 %v801, %v802
    %v804 = vshll.u32 2102212464, %v792
    %v805 = vshrl.u32 920167782, %v793
    %v806 = vor.u32 %v804, %v805
    %v807 = vshll.u32 920167782, %v792
    %v808 = vshrl.u32 1326507024, %v793
    %v809 = vor.u32 %v807, %v808
    %vm810 = vcmp.lt.s32.totalorder %v791, 1
    %vm811 = vcmp.lt.s32.totalorder %v791, 2
    %vm812 = vcmp.lt.s32.totalorder %v791, 3
    %vm813 = vcmp.lt.s32.totalorder %v791, 4
    %v814 = vsel %vm810, %v794, %v797
    %v815 = vsel %vm813, %v803, 2102212464
    %v816 = vsel %vm812, %v800, %v815
    %v817 = vsel %vm811, %v814, %v816
    %v818 = vsel %vm810, %v797, %v800
    %v819 = vsel %vm813, %v806, 920167782
    %v820 = vsel %vm812, %v803, %v819
    %v821 = vsel %vm811, %v818, %v820
    %v822 = vsel %vm810, %v800, %v803
    %v823 = vsel %vm813, %v809, 1326507024
    %v824 = vsel %vm812, %v806, %v823
    %v825 = vsel %vm811, %v822, %v824
    %v826 = vshll.u32 %v786, 8
    %v827 = vmul.u32.u64.compose %v826, %v825
    %v828 = vextract.low.u32 %v827
    %v829 = vextract.high.u32 %v827
    %v830 = vmul.u32.u64.compose %v826, %v821
    %v831 = vextract.low.u32 %v830
    %v832 = vextract.high.u32 %v830
    %v833 = vmul.u32 %v826, %v817
    %v834 = vadd.s32 %v829, %v831
    %vm835 = vc.u32 %v829, %v831
    %v836 = vadd.s32 %v832, 1
    %v837 = vsel %vm835, %v836, %v832
    %v838 = vadd.s32 %v833, %v837
    %v839 = vadd.s32 %v838, 536870912
    %v840 = vshrl.u32 %v839, 30
    %v841 = vshll.u32 %v840, 30
    %v842 = vsub.s32 %v838, %v841
    %vm843 = vcmp.lt.s32.totalorder %v842, 0
    %v844 = vsub.s32 0, %v842
    %v845 = vsel %vm843, %v844, %v842
    %v846 = vclz %v845
    %v847 = vsub.s32 %v846, 2
    %vm848 = vcmp.gt.s32.totalorder 0, %v847
    %v849 = vsel %vm848, 0, %v847
    %v850 = vsub.s32 32, %v849
    %v851 = vshll.u32 %v842, %v849
    %v852 = vshrl.u32 %v834, %v850
    %v853 = vor.u32 %v851, %v852
    %v854 = vsub.s32 4294967266, %v849
    %v855 = vadd.s32 %v854, 127
    %v856 = vshll.u32 %v855, 23
    %v857 = vor.u32 4788187, %v856
    %v858 = vand.u32 2147483647, %v857
    %v860 = vcvt.s32.f32 %v853
    %v861 = vmul.f32 %v860, %v858
    %v862 = vxor.u32 %v861, 2147483648
    %v863 = vsel %vm780, %v862, %v861
    %v864 = vsub.s32 4, %v840
    %v865 = vsel %vm780, %v864, %v840
    %v866 = vsel %vm779, %v52, %v863
    %v867 = vsel %vm779, 0, %v865
    %v868 = vcosq.f32.pop %v866
    %v869 = vsinq.f32.pop %v866
    %vm870 = vweird.f32 %v52
    %v871 = vand.u32 %v867, 3
    %vm872 = vcmp.lt.s32.totalorder %v871, 2
    %vm873 = vcmp.eq.s32.totalorder %v871, 0
    %v874 = vxor.u32 %v869, 2147483648
    %v875 = vsel %vm873, %v868, %v874
    %vm876 = vcmp.eq.s32.totalorder %v871, 2
    %v877 = vxor.u32 %v868, 2147483648
    %v878 = vsel %vm876, %v877, %v869
    %v879 = vsel %vm872, %v875, %v878
    %v880 = vsel %vm870, nan, %v879
    %v881 = vmul.f32 %v571, 2.0
    %v882 = vmul.f32 %v674, 2.0
    %v883 = vmul.f32 %v777, 2.0
    %v884 = vmul.f32 %v880, 2.0
    %v885 = vmul.f32 %v881, %v156
    %v886 = vmul.f32 %v882, %v260
    %v887 = vmul.f32 %v883, %v364
    %v888 = vmul.f32 %v884, %v468
    %v889 = vmul.f32 %v881, %v571
    %v890 = vmul.f32 %v882, %v674
    %v891 = vmul.f32 %v883, %v777
    %v892 = vmul.f32 %v884, %v880
    %v893 = vsub.f32 %v889, 1.0
    %v894 = vsub.f32 %v890, 1.0
    %v895 = vsub.f32 %v891, 1.0
    %v896 = vsub.f32 %v892, 1.0
    %v897 = vmul.f32 %v881, %v885
    %v898 = vmul.f32 %v882, %v886
    %v899 = vmul.f32 %v883, %v887
    %v900 = vmul.f32 %v884, %v888
    %v901 = vsub.f32 %v897, %v156
    %v902 = vsub.f32 %v898, %v260
    %v903 = vsub.f32 %v899, %v364
    %v904 = vsub.f32 %v900, %v468
    %v905 = vmul.f32 %v881, %v893
    %v906 = vmul.f32 %v882, %v894
    %v907 = vmul.f32 %v883, %v895
    %v908 = vmul.f32 %v884, %v896
    %v909 = vsub.f32 %v905, %v571
    %v910 = vsub.f32 %v906, %v674
    %v911 = vsub.f32 %v907, %v777
    %v912 = vsub.f32 %v908, %v880
    %v913 = vmul.f32 %v881, %v901
    %v914 = vmul.f32 %v882, %v902
    %v915 = vmul.f32 %v883, %v903
    %v916 = vmul.f32 %v884, %v904
    %v917 = vsub.f32 %v913, %v885
    %v918 = vsub.f32 %v914, %v886
    %v919 = vsub.f32 %v915, %v887
    %v920 = vsub.f32 %v916, %v888
    %v921 = vmul.f32 %v881, %v909
    %v922 = vmul.f32 %v882, %v910
    %v923 = vmul.f32 %v883, %v911
    %v924 = vmul.f32 %v884, %v912
    %v925 = vsub.f32 %v921, %v893
    %v926 = vsub.f32 %v922, %v894
    %v927 = vsub.f32 %v923, %v895
    %v928 = vsub.f32 %v924, %v896
    %v929 = vld [vmem:[%s2] sm:$0xff]
    %v930 = vld [vmem:[%s2 + $0x8] sm:$0xff]
    %v931 = vld [vmem:[%s2 + $0x10] sm:$0xff]
    %v932 = vld [vmem:[%s2 + $0x18] sm:$0xff]
    %v933 = vld [vmem:[%s2 + $0x20] sm:$0xff]
    %v934 = vld [vmem:[%s2 + $0x28] sm:$0xff]
    %v935 = vld [vmem:[%s2 + $0x30] sm:$0xff]
    %v936 = vld [vmem:[%s2 + $0x38] sm:$0xff]
    %v937 = vld [vmem:[%s3] sm:$0xff]
    %v938 = vld [vmem:[%s3 + $0x8] sm:$0xff]
    %v939 = vld [vmem:[%s3 + $0x10] sm:$0xff]
    %v940 = vld [vmem:[%s3 + $0x18] sm:$0xff]
    %942 = vset.pattern.permute.xlu0 0
    %943 = vperm.xlu0 %942, %v937
    %v944 = vpop.permute.xlu0 %943
    %947 = vset.pattern.permute.xlu0 0
    %948 = vperm.xlu0 %947, %v938
    %v949 = vpop.permute.xlu0 %948
    %952 = vset.pattern.permute.xlu0 0
    %953 = vperm.xlu0 %952, %v939
    %v954 = vpop.permute.xlu0 %953
    %957 = vset.pattern.permute.xlu0 0
    %958 = vperm.xlu0 %957, %v940
    %v959 = vpop.permute.xlu0 %958
    %961 = vmatprep.subr.mxu0 0.0
    %962 = vmatpush1.msra.mxu0 %v156
    %963 = vmatprep.subr.mxu0 0.0
    %964 = vmatpush1.msra.mxu0 %v260
    %965 = vmatprep.subr.mxu0 0.0
    %966 = vmatpush1.msra.mxu0 %v364
    %967 = vmatprep.subr.mxu0 0.0
    %968 = vmatpush1.msra.mxu0 %v468
    %969 = vmatprep.subr.mxu0 0.0
    %970 = vmatpush1.msra.mxu0 %v885
    %971 = vmatprep.subr.mxu0 0.0
    %972 = vmatpush1.msra.mxu0 %v886
    %973 = vmatprep.subr.mxu0 0.0
    %974 = vmatpush1.msra.mxu0 %v887
    %975 = vmatprep.subr.mxu0 0.0
    %976 = vmatpush1.msra.mxu0 %v888
    %977 = vmatprep.subr.mxu0 0.0
    %978 = vmatpush1.msra.mxu0 %v901
    %979 = vmatprep.subr.mxu0 0.0
    %980 = vmatpush1.msra.mxu0 %v902
    %981 = vmatprep.subr.mxu0 0.0
    %982 = vmatpush1.msra.mxu0 %v903
    %983 = vmatprep.subr.mxu0 0.0
    %984 = vmatpush1.msra.mxu0 %v904
    %985 = vmatprep.subr.mxu0 0.0
    %986 = vmatpush1.msra.mxu0 %v917
    %987 = vmatprep.subr.mxu0 0.0
    %988 = vmatpush1.msra.mxu0 %v918
    %989 = vmatprep.subr.mxu0 0.0
    %990 = vmatpush1.msra.mxu0 %v919
    %991 = vmatprep.subr.mxu0 0.0
    %992 = vmatpush1.msra.mxu0 %v920
    %993 = vmatprep.subr.mxu0 0.0
    %994 = vmatpush1.msra.mxu0 %v571
    %995 = vmatprep.subr.mxu0 0.0
    %996 = vmatpush1.msra.mxu0 %v674
    %997 = vmatprep.subr.mxu0 0.0
    %998 = vmatpush1.msra.mxu0 %v777
    %999 = vmatprep.subr.mxu0 0.0
    %1000 = vmatpush1.msra.mxu0 %v880
    %1001 = vmatprep.subr.mxu0 0.0
    %1002 = vmatpush1.msra.mxu0 %v893
    %1003 = vmatprep.subr.mxu0 0.0
    %1004 = vmatpush1.msra.mxu0 %v894
    %1005 = vmatprep.subr.mxu0 0.0
    %1006 = vmatpush1.msra.mxu0 %v895
    %1007 = vmatprep.subr.mxu0 0.0
    %1008 = vmatpush1.msra.mxu0 %v896
    %1009 = vmatprep.subr.mxu0 0.0
    %1010 = vmatpush1.msra.mxu0 %v909
    %1011 = vmatprep.subr.mxu0 0.0
    %1012 = vmatpush1.msra.mxu0 %v910
    %1013 = vmatprep.subr.mxu0 0.0
    %1014 = vmatpush1.msra.mxu0 %v911
    %1015 = vmatprep.subr.mxu0 0.0
    %1016 = vmatpush1.msra.mxu0 %v912
    %1017 = vmatprep.subr.mxu0 0.0
    %1018 = vmatpush1.msra.mxu0 %v925
    %1019 = vmatprep.subr.mxu0 0.0
    %1020 = vmatpush1.msra.mxu0 %v926
    %1021 = vmatprep.subr.mxu0 0.0
    %1022 = vmatpush1.msra.mxu0 %v927
    %1023 = vmatprep.subr.mxu0 0.0
    %1024 = vmatpush1.msra.mxu0 %v928
    %1025 = vmatprep.mubr.f32.mxu0 %v930
    %1026 = vmatmul.mubr.f32.gmra.mrb[0].mxu0 %v929
    %v1027 = vpop.f32.mrb[0].mxu0
    %v1028 = vadd.f32 %v944, %v1027
    %v1029 = vpop.f32.mrb[0].mxu0
    %1030 = vmatprep.mubr.f32.mxu0 %v932
    %1031 = vmatmul.mubr.f32.gmra.mrb[0].mxu0 %v931
    %v1032 = vpop.f32.mrb[0].mxu0
    %v1033 = vadd.f32 %v949, %v1032
    %v1034 = vpop.f32.mrb[0].mxu0
    %1035 = vmatprep.mubr.f32.mxu0 %v934
    %1036 = vmatmul.mubr.f32.gmra.mrb[0].mxu0 %v933
    %v1037 = vpop.f32.mrb[0].mxu0
    %v1038 = vadd.f32 %v954, %v1037
    %v1039 = vpop.f32.mrb[0].mxu0
    %1040 = vmatprep.mubr.f32.mxu0 %v936
    %1041 = vmatmul.mubr.f32.gmra.mrb[0].mxu0 %v935
    %v1042 = vpop.f32.mrb[0].mxu0
    %v1043 = vadd.f32 %v959, %v1042
    %v1044 = vpop.f32.mrb[0].mxu0
    %1045 = vdwg.mxu0
    %1046 = vst [vmem:[#allocation2] sm:$0xff] %v1028
    %1047 = vst [vmem:[#allocation2 + $0x8] sm:$0xff] %v1033
    %1048 = vst [vmem:[#allocation2 + $0x10] sm:$0xff] %v1038
    %1049 = vst [vmem:[#allocation2 + $0x18] sm:$0xff] %v1043
    // Predicated region
    $region18: #{tpu_custom_call.1} parent=1 // pred_check
      _
    $region19: #{tpu_custom_call.1} parent=1 // pred_check_branch
      %1051 = sbr.rel (0) target = $region21
    $region20: #{tpu_custom_call.1} parent=1 // pred_region
      %s1053 = ssub.s32 512, 512
      %1054 = vsyncadd [#allocation3], %s1053
      %s1055 = sshll.u32 [#allocation2], 4
      %s1056 = int_to_ptr.vmem [resolvable:$true] %s1055
      %1061 = dma.vmem_to_hbm [thread:$0]  %s1056, 512, %s4, [#allocation3], 128, 128, 8
    $region21: #{tpu_custom_call.1} parent=1 // pred_fallthru
      _
    // Predicated region
    $region22: #{tpu_custom_call.1} parent=1 // pred_check
      _
    $region23: #{tpu_custom_call.1} parent=1 // pred_check_branch
      %1063 = sbr.rel (0) target = $region25
    $region24: #{tpu_custom_call.1} parent=1 // pred_region
      %1064 = dma.done [#allocation3], 512
    $region25: #{tpu_custom_call.1} parent=1 // pred_fallthru
      _
    %1065 = vsyncpa [#allocation3], 1

</llo_original>
